<compile_context>
chip_gen: v7x
topology: tpu7x:2x2x1
jax: 0.10.0
libtpu: 0.0.40
codegen_flags: <defaults>
</compile_context>

<pallas_src>
import functools

import jax
import jax.numpy as jnp
import numpy as np
from jax import lax
from jax.experimental import pallas as pl
from jax.experimental.pallas import tpu as pltpu


def _ftl_sums_kernel(pred_ref, label_ref, tp_ref, ps_ref, cnt_ref,
                     *, hw, tile_hw, needs_mask):
    """Accumulates per-class tp / p_sum / one_hot-count as (C, 128) lane partials.

    pred_ref : (C, tile_hw)  float (f32 or bf16), predictions for one depth slice
    label_ref: (1, tile_hw)  int32 class ids
    tp_ref, ps_ref, cnt_ref: (C, 128) f32 outputs, resident across the tile axis.
    """
    t = pl.program_id(1)

    @pl.when(t == 0)
    def _():
        tp_ref[...] = jnp.zeros_like(tp_ref)
        ps_ref[...] = jnp.zeros_like(ps_ref)
        cnt_ref[...] = jnp.zeros_like(cnt_ref)

    C = pred_ref.shape[0]
    n_chunks = tile_hw // 128

    # Hoisted broadcasts (JAX does not CSE broadcast_in_dim inside the loop).
    cls_ids = lax.broadcasted_iota(jnp.int32, (C, 128), 0)
    if needs_mask:
        # Global lane position of chunk 0 of this tile; per-chunk we only add a
        # static offset (one VPU add + one compare per chunk).
        pos0 = t * tile_hw + lax.broadcasted_iota(jnp.int32, (C, 128), 1)

    acc_tp = jnp.zeros((C, 128), jnp.float32)
    acc_ps = jnp.zeros((C, 128), jnp.float32)
    acc_cnt = jnp.zeros((C, 128), jnp.float32)

    # Fold the wide tile lane-wise in 128-lane chunks: VPU-only, no XLU reduce.
    # Fully unrolled static loop (<= 64 chunks at the default tile) keeps the
    # LLO scheduler's view of the whole straight-line body.
    for j in range(n_chunks):
        lo = j * 128
        p = pred_ref[:, lo:lo + 128].astype(jnp.float32)     # (C, 128)
        lbl = label_ref[:, lo:lo + 128]                      # (1, 128) int32
        one_hot = lbl == cls_ids                             # (C, 128) bool
        if needs_mask:
            valid = (pos0 + lo) < hw                         # (C, 128) bool
            one_hot = jnp.logical_and(one_hot, valid)
            p = jnp.where(valid, p, 0.0)                     # garbage-safe (NaN-proof)
        ohf = one_hot.astype(jnp.float32)
        acc_tp = acc_tp + p * ohf
        acc_ps = acc_ps + p
        acc_cnt = acc_cnt + ohf

    tp_ref[...] += acc_tp
    ps_ref[...] += acc_ps
    cnt_ref[...] += acc_cnt


def focal_tversky_loss(y_pred, y_true, *, alpha=0.7, gamma=3.0 / 4.0,
                       eps=1e-6, suppress_bkg=False, tile_hw=8192):
    """y_pred: (D, C, H, W) float32/bfloat16, y_true: (D, H, W) int -> scalar f32 loss."""
    D, C, H, W = y_pred.shape
    HW = H * W

    # Free layout change only: no transpose, no padding copy.
    pred = y_pred.reshape(D, C, HW)
    labels = y_true.reshape(D, 1, HW).astype(jnp.int32)

    # Lane tile: multiple of 128, capped at the (128-rounded) pixel count.
    tile_hw = max(128, min(int(tile_hw), pl.cdiv(HW, 128) * 128))
    tile_hw = (tile_hw // 128) * 128
    n_tiles = pl.cdiv(HW, tile_hw)
    needs_mask = (HW % tile_hw) != 0

    kernel = functools.partial(
        _ftl_sums_kernel, hw=HW, tile_hw=tile_hw, needs_mask=needs_mask)

    out_struct = jax.ShapeDtypeStruct((D, C, 128), jnp.float32)
    tp_p, ps_p, cnt_p = pl.pallas_call(
        kernel,
        out_shape=(out_struct, out_struct, out_struct),
        grid_spec=pltpu.PrefetchScalarGridSpec(
            num_scalar_prefetch=0,
            grid=(D, n_tiles),
            in_specs=[
                pl.BlockSpec((None, C, tile_hw), lambda d, t: (d, 0, t)),
                pl.BlockSpec((None, 1, tile_hw), lambda d, t: (d, 0, t)),
            ],
            out_specs=[
                pl.BlockSpec((None, C, 128), lambda d, t: (d, 0, 0)),
                pl.BlockSpec((None, C, 128), lambda d, t: (d, 0, 0)),
                pl.BlockSpec((None, C, 128), lambda d, t: (d, 0, 0)),
            ],
        ),
        compiler_params=pltpu.CompilerParams(
            # D axis -> megacore split on v7x; pixel-tile axis is a reduction.
            dimension_semantics=("parallel", "arbitrary"),
            # Explicit budget sized against v7x's 64 MiB physical / 32 MiB scoped VMEM.
            vmem_limit_bytes=32 * 1024 * 1024,
        ),
    )(pred, labels)

    # Tiny O(C) epilogue in plain JAX (matches the PyTorch formulation exactly).
    tp = jnp.sum(tp_p, axis=(0, 2))
    p_sum = jnp.sum(ps_p, axis=(0, 2))
    cnt = jnp.sum(cnt_p, axis=(0, 2))
    fp = p_sum - tp
    fn = cnt - tp
    tversky = tp / (tp + alpha * fn + (1.0 - alpha) * fp + eps)
    if suppress_bkg:
        bkg = (1.0 - tversky[0])[None]
        fg = (1.0 - tversky[1:]) * (1.0 - tversky[1:]) ** (-gamma)
        focal = jnp.concatenate([bkg, fg], axis=0)
    else:
        focal = (1.0 - tversky) ** gamma
    return jnp.mean(focal)


def _reference_loss(y_pred, y_true, alpha=0.7, gamma=3.0 / 4.0, eps=1e-6,
                    suppress_bkg=False):
    """Pure-JAX reference mirroring the PyTorch module."""
    C = y_pred.shape[1]
    y_pred = y_pred.astype(jnp.float32)
    one_hot = jax.nn.one_hot(y_true.astype(jnp.int32), C, axis=1, dtype=jnp.float32)
    tp = jnp.sum(y_pred * one_hot, axis=(0, 2, 3))
    fp = jnp.sum((1 - one_hot) * y_pred, axis=(0, 2, 3))
    fn = jnp.sum(one_hot * (1 - y_pred), axis=(0, 2, 3))
    t = tp / (tp + alpha * fn + (1 - alpha) * fp + eps)
    if suppress_bkg:
        bkg = (1 - t[0])[None]
        fg = (1 - t[1:]) * (1 - t[1:]) ** (-gamma)
        focal = jnp.concatenate([bkg, fg], axis=0)
    else:
        focal = (1 - t) ** gamma
    return jnp.mean(focal)


if __name__ == "__main__":
    key = jax.random.PRNGKey(0)
    k1, k2, k3, k4 = jax.random.split(key, 4)

    # Primary shapes implied by the module: y_pred (D, C, H, W), y_true (D, H, W).
    D, C, H, W = 2, 4, 16, 16
    logits = jax.random.normal(k1, (D, C, H, W), dtype=jnp.float32)
    y_pred = jax.nn.softmax(logits, axis=1)                               # probs
    y_true = jax.random.randint(k2, (D, H, W), 0, C, dtype=jnp.int32)     # labels

    # 1) default (wide) tiling, f32 transport -> exact module semantics
    loss = jax.block_until_ready(focal_tversky_loss(y_pred, y_true))
    ref = _reference_loss(y_pred, y_true)
    np.testing.assert_allclose(np.asarray(loss), np.asarray(ref), rtol=1e-5, atol=1e-6)

    # 2) multi-tile accumulation over the pixel axis
    loss_mt = jax.block_until_ready(focal_tversky_loss(y_pred, y_true, tile_hw=128))
    np.testing.assert_allclose(np.asarray(loss_mt), np.asarray(ref), rtol=1e-5, atol=1e-6)

    # 3) bf16 prediction transport (halves pred HBM traffic; f32 accumulation)
    loss_bf16 = jax.block_until_ready(
        focal_tversky_loss(y_pred.astype(jnp.bfloat16), y_true))
    ref_bf16 = _reference_loss(y_pred.astype(jnp.bfloat16).astype(jnp.float32), y_true)
    np.testing.assert_allclose(np.asarray(loss_bf16), np.asarray(ref_bf16),
                               rtol=1e-4, atol=1e-5)

    # 4) odd spatial size (in-kernel tail mask, no host padding) + suppress_bkg path
    D2, C2, H2, W2 = 1, 3, 13, 13
    logits2 = jax.random.normal(k3, (D2, C2, H2, W2), dtype=jnp.float32)
    y_pred2 = jax.nn.softmax(logits2, axis=1)
    y_true2 = jax.random.randint(k4, (D2, H2, W2), 0, C2, dtype=jnp.int32)
    loss2 = jax.block_until_ready(
        focal_tversky_loss(y_pred2, y_true2, suppress_bkg=True, tile_hw=128))
    ref2 = _reference_loss(y_pred2, y_true2, suppress_bkg=True)
    np.testing.assert_allclose(np.asarray(loss2), np.asarray(ref2), rtol=1e-5, atol=1e-6)

    print("KERNEL_OK")
</pallas_src>

<mosaic_0001>
module attributes {stable_mosaic.version = 11 : i64} {
  func.func @_ftl_sums_kernel(%arg0: i32, %arg1: i32, %arg2: memref<1x4x256xf32, #tpu.memory_space<vmem>>, %arg3: memref<1x1x256xi32, #tpu.memory_space<vmem>>, %arg4: memref<1x4x128xf32, #tpu.memory_space<vmem>>, %arg5: memref<1x4x128xf32, #tpu.memory_space<vmem>>, %arg6: memref<1x4x128xf32, #tpu.memory_space<vmem>>) attributes {dimension_semantics = [#tpu.dimension_semantics<parallel>, #tpu.dimension_semantics<arbitrary>], iteration_bounds = array<i64: 2, 1>, scalar_prefetch = 0 : i64, scratch_operands = 0 : i64, tpu.core_type = #tpu.core_type<tc>, window_params = [{transform_indices = @transform_0, window_bounds = array<i64: 1, 4, 256>}, {transform_indices = @transform_1, window_bounds = array<i64: 1, 1, 256>}, {transform_indices = @transform_2, window_bounds = array<i64: 1, 4, 128>}, {transform_indices = @transform_3, window_bounds = array<i64: 1, 4, 128>}, {transform_indices = @transform_4, window_bounds = array<i64: 1, 4, 128>}]} {
    %c0_i32 = arith.constant 0 : i32
    %0 = arith.cmpi eq, %arg1, %c0_i32 : i32
    %1 = arith.extui %0 : i1 to i32
    %c0_i32_0 = arith.constant 0 : i32
    %2 = arith.cmpi ne, %1, %c0_i32_0 : i32
    scf.if %2 {
      %cst_31 = arith.constant 0.000000e+00 : f32
      %49 = vector.broadcast %cst_31 : f32 to vector<4x128xf32>
      %c0_32 = arith.constant 0 : index
      %c0_33 = arith.constant 0 : index
      %c0_34 = arith.constant 0 : index
      %50 = vector.load %arg4[%c0_32, %c0_33, %c0_34] : memref<1x4x128xf32, #tpu.memory_space<vmem>>, vector<1x4x128xf32>
      %51 = vector.shape_cast %50 : vector<1x4x128xf32> to vector<4x128xf32>
      %52 = vector.shape_cast %49 : vector<4x128xf32> to vector<1x4x128xf32>
      tpu.vector_store %arg4[%c0_32, %c0_33, %c0_34], %52 {strides = array<i32>} : memref<1x4x128xf32, #tpu.memory_space<vmem>>, vector<1x4x128xf32>,
      %cst_35 = arith.constant 0.000000e+00 : f32
      %53 = vector.broadcast %cst_35 : f32 to vector<4x128xf32>
      %c0_36 = arith.constant 0 : index
      %c0_37 = arith.constant 0 : index
      %c0_38 = arith.constant 0 : index
      %54 = vector.load %arg5[%c0_36, %c0_37, %c0_38] : memref<1x4x128xf32, #tpu.memory_space<vmem>>, vector<1x4x128xf32>
      %55 = vector.shape_cast %54 : vector<1x4x128xf32> to vector<4x128xf32>
      %56 = vector.shape_cast %53 : vector<4x128xf32> to vector<1x4x128xf32>
      tpu.vector_store %arg5[%c0_36, %c0_37, %c0_38], %56 {strides = array<i32>} : memref<1x4x128xf32, #tpu.memory_space<vmem>>, vector<1x4x128xf32>,
      %cst_39 = arith.constant 0.000000e+00 : f32
      %57 = vector.broadcast %cst_39 : f32 to vector<4x128xf32>
      %c0_40 = arith.constant 0 : index
      %c0_41 = arith.constant 0 : index
      %c0_42 = arith.constant 0 : index
      %58 = vector.load %arg6[%c0_40, %c0_41, %c0_42] : memref<1x4x128xf32, #tpu.memory_space<vmem>>, vector<1x4x128xf32>
      %59 = vector.shape_cast %58 : vector<1x4x128xf32> to vector<4x128xf32>
      %60 = vector.shape_cast %57 : vector<4x128xf32> to vector<1x4x128xf32>
      tpu.vector_store %arg6[%c0_40, %c0_41, %c0_42], %60 {strides = array<i32>} : memref<1x4x128xf32, #tpu.memory_space<vmem>>, vector<1x4x128xf32>,
    } else {
    }
    %3 = tpu.iota {dimensions = array<i32: 0>} : vector<4x128xi32>
    %cst = arith.constant 0.000000e+00 : f32
    %4 = vector.broadcast %cst : f32 to vector<4x128xf32>
    %cst_1 = arith.constant 0.000000e+00 : f32
    %5 = vector.broadcast %cst_1 : f32 to vector<4x128xf32>
    %cst_2 = arith.constant 0.000000e+00 : f32
    %6 = vector.broadcast %cst_2 : f32 to vector<4x128xf32>
    %c0 = arith.constant 0 : index
    %c0_3 = arith.constant 0 : index
    %c0_4 = arith.constant 0 : index
    %7 = vector.load %arg2[%c0, %c0_3, %c0_4] : memref<1x4x256xf32, #tpu.memory_space<vmem>>, vector<1x4x128xf32>
    %8 = vector.shape_cast %7 : vector<1x4x128xf32> to vector<4x128xf32>
    %c0_5 = arith.constant 0 : index
    %c0_6 = arith.constant 0 : index
    %c0_7 = arith.constant 0 : index
    %9 = vector.load %arg3[%c0_5, %c0_6, %c0_7] : memref<1x1x256xi32, #tpu.memory_space<vmem>>, vector<1x1x128xi32>
    %10 = vector.shape_cast %9 : vector<1x1x128xi32> to vector<1x128xi32>
    %11 = vector.broadcast %10 : vector<1x128xi32> to vector<4x128xi32>
    %12 = arith.cmpi eq, %11, %3 : vector<4x128xi32>
    %13 = arith.extui %12 : vector<4x128xi1> to vector<4x128xi32>
    %14 = arith.sitofp %13 : vector<4x128xi32> to vector<4x128xf32>
    %15 = arith.mulf %8, %14 : vector<4x128xf32>
    %16 = arith.addf %4, %15 : vector<4x128xf32>
    %17 = arith.addf %5, %8 : vector<4x128xf32>
    %18 = arith.addf %6, %14 : vector<4x128xf32>
    %c0_8 = arith.constant 0 : index
    %c0_9 = arith.constant 0 : index
    %c128 = arith.constant 128 : index
    %19 = vector.load %arg2[%c0_8, %c0_9, %c128] : memref<1x4x256xf32, #tpu.memory_space<vmem>>, vector<1x4x128xf32>
    %20 = vector.shape_cast %19 : vector<1x4x128xf32> to vector<4x128xf32>
    %c0_10 = arith.constant 0 : index
    %c0_11 = arith.constant 0 : index
    %c128_12 = arith.constant 128 : index
    %21 = vector.load %arg3[%c0_10, %c0_11, %c128_12] : memref<1x1x256xi32, #tpu.memory_space<vmem>>, vector<1x1x128xi32>
    %22 = vector.shape_cast %21 : vector<1x1x128xi32> to vector<1x128xi32>
    %23 = vector.broadcast %22 : vector<1x128xi32> to vector<4x128xi32>
    %24 = arith.cmpi eq, %23, %3 : vector<4x128xi32>
    %25 = arith.extui %24 : vector<4x128xi1> to vector<4x128xi32>
    %26 = arith.sitofp %25 : vector<4x128xi32> to vector<4x128xf32>
    %27 = arith.mulf %20, %26 : vector<4x128xf32>
    %28 = arith.addf %16, %27 : vector<4x128xf32>
    %29 = arith.addf %17, %20 : vector<4x128xf32>
    %30 = arith.addf %18, %26 : vector<4x128xf32>
    %c0_13 = arith.constant 0 : index
    %c0_14 = arith.constant 0 : index
    %c0_15 = arith.constant 0 : index
    %31 = vector.load %arg4[%c0_13, %c0_14, %c0_15] : memref<1x4x128xf32, #tpu.memory_space<vmem>>, vector<1x4x128xf32>
    %32 = vector.shape_cast %31 : vector<1x4x128xf32> to vector<4x128xf32>
    %33 = arith.addf %32, %28 : vector<4x128xf32>
    %c0_16 = arith.constant 0 : index
    %c0_17 = arith.constant 0 : index
    %c0_18 = arith.constant 0 : index
    %34 = vector.load %arg4[%c0_16, %c0_17, %c0_18] : memref<1x4x128xf32, #tpu.memory_space<vmem>>, vector<1x4x128xf32>
    %35 = vector.shape_cast %34 : vector<1x4x128xf32> to vector<4x128xf32>
    %36 = vector.shape_cast %33 : vector<4x128xf32> to vector<1x4x128xf32>
    tpu.vector_store %arg4[%c0_16, %c0_17, %c0_18], %36 {strides = array<i32>} : memref<1x4x128xf32, #tpu.memory_space<vmem>>, vector<1x4x128xf32>,
    %c0_19 = arith.constant 0 : index
    %c0_20 = arith.constant 0 : index
    %c0_21 = arith.constant 0 : index
    %37 = vector.load %arg5[%c0_19, %c0_20, %c0_21] : memref<1x4x128xf32, #tpu.memory_space<vmem>>, vector<1x4x128xf32>
    %38 = vector.shape_cast %37 : vector<1x4x128xf32> to vector<4x128xf32>
    %39 = arith.addf %38, %29 : vector<4x128xf32>
    %c0_22 = arith.constant 0 : index
    %c0_23 = arith.constant 0 : index
    %c0_24 = arith.constant 0 : index
    %40 = vector.load %arg5[%c0_22, %c0_23, %c0_24] : memref<1x4x128xf32, #tpu.memory_space<vmem>>, vector<1x4x128xf32>
    %41 = vector.shape_cast %40 : vector<1x4x128xf32> to vector<4x128xf32>
    %42 = vector.shape_cast %39 : vector<4x128xf32> to vector<1x4x128xf32>
    tpu.vector_store %arg5[%c0_22, %c0_23, %c0_24], %42 {strides = array<i32>} : memref<1x4x128xf32, #tpu.memory_space<vmem>>, vector<1x4x128xf32>,
    %c0_25 = arith.constant 0 : index
    %c0_26 = arith.constant 0 : index
    %c0_27 = arith.constant 0 : index
    %43 = vector.load %arg6[%c0_25, %c0_26, %c0_27] : memref<1x4x128xf32, #tpu.memory_space<vmem>>, vector<1x4x128xf32>
    %44 = vector.shape_cast %43 : vector<1x4x128xf32> to vector<4x128xf32>
    %45 = arith.addf %44, %30 : vector<4x128xf32>
    %c0_28 = arith.constant 0 : index
    %c0_29 = arith.constant 0 : index
    %c0_30 = arith.constant 0 : index
    %46 = vector.load %arg6[%c0_28, %c0_29, %c0_30] : memref<1x4x128xf32, #tpu.memory_space<vmem>>, vector<1x4x128xf32>
    %47 = vector.shape_cast %46 : vector<1x4x128xf32> to vector<4x128xf32>
    %48 = vector.shape_cast %45 : vector<4x128xf32> to vector<1x4x128xf32>
    tpu.vector_store %arg6[%c0_28, %c0_29, %c0_30], %48 {strides = array<i32>} : memref<1x4x128xf32, #tpu.memory_space<vmem>>, vector<1x4x128xf32>,
    return
  }
  func.func @transform_0(%arg0: i32, %arg1: i32) -> (i32, i32, i32) {
    %c0_i32 = arith.constant 0 : i32
    %c0_i32_0 = arith.constant 0 : i32
    return %arg0, %c0_i32, %arg1 : i32, i32, i32
  }
  func.func @transform_1(%arg0: i32, %arg1: i32) -> (i32, i32, i32) {
    %c0_i32 = arith.constant 0 : i32
    %c0_i32_0 = arith.constant 0 : i32
    return %arg0, %c0_i32, %arg1 : i32, i32, i32
  }
  func.func @transform_2(%arg0: i32, %arg1: i32) -> (i32, i32, i32) {
    %c0_i32 = arith.constant 0 : i32
    %c0_i32_0 = arith.constant 0 : i32
    %c0_i32_1 = arith.constant 0 : i32
    return %arg0, %c0_i32, %c0_i32_0 : i32, i32, i32
  }
  func.func @transform_3(%arg0: i32, %arg1: i32) -> (i32, i32, i32) {
    %c0_i32 = arith.constant 0 : i32
    %c0_i32_0 = arith.constant 0 : i32
    %c0_i32_1 = arith.constant 0 : i32
    return %arg0, %c0_i32, %c0_i32_0 : i32, i32, i32
  }
  func.func @transform_4(%arg0: i32, %arg1: i32) -> (i32, i32, i32) {
    %c0_i32 = arith.constant 0 : i32
    %c0_i32_0 = arith.constant 0 : i32
    %c0_i32_1 = arith.constant 0 : i32
    return %arg0, %c0_i32, %c0_i32_0 : i32, i32, i32
  }
}

</mosaic_0001>

<llo_original>
// kernel: tpu_custom_call.1
$region0: #{tpu_custom_call.1}
  #allocation0 [shape = 'u32[]', space=smem, size = 0x4, offset = 0x4, fixed_abs, tag = 'smem constant byte address 0x4 - core index']
  #allocation1 [shape = 'u32[144,128]{1,0:T(1,128)}', space=vmem, size = 0x12000, scoped, tag = 'internal scratch']
  %s0 = inlined_call_operand.hbm [shape: f32[2,4,256], index: 0, kind: input, shape index: {}]
  %s1 = inlined_call_operand.hbm [shape: s32[2,1,256], index: 1, kind: input, shape index: {}]
  %s2 = inlined_call_operand.hbm [shape: f32[2,4,128], index: 2, kind: output, shape index: {0}]
  %s3 = inlined_call_operand.hbm [shape: f32[2,4,128], index: 3, kind: output, shape index: {1}]
  %s4 = inlined_call_operand.hbm [shape: f32[2,4,128], index: 4, kind: output, shape index: {2}]
  %5 = xla_tuple %s2, %s3, %s4
  %s6 = sld [smem:[#allocation0]]
  $region69: #{tpu_custom_call.1} parent=0
    _
  %s8 = ssub.s32 1, %s6
  %s9 = scalar_select 0, %s8, %s6
  $region1: #{tpu_custom_call.1} parent=0
    #allocation2 [shape = 'u8[8192]{0}', space=vmem, size = 0x2000, scoped, tag = 'input window, operand 0']
    #allocation3 [shape = 's32[2]{0}', space=sflag, size = 0x8, scoped, tag = 'scoped memory for tpu_custom_call.1']
    #allocation4 [shape = 's32[2]{0}', space=sflag, size = 0x8, scoped, tag = 'scoped memory for tpu_custom_call.1']
    #allocation5 [shape = 'u8[2048]{0}', space=vmem, size = 0x800, scoped, tag = 'input window, operand 1']
    #allocation6 [shape = 's32[2]{0}', space=sflag, size = 0x8, scoped, tag = 'scoped memory for tpu_custom_call.1']
    #allocation7 [shape = 'u8[4096]{0}', space=vmem, size = 0x1000, scoped, tag = 'output window, operand 0']
    #allocation8 [shape = 'u8[4096]{0}', space=vmem, size = 0x1000, scoped, tag = 'output window, operand 1']
    #allocation9 [shape = 's32[2]{0}', space=sflag, size = 0x8, scoped, tag = 'scoped memory for tpu_custom_call.1']
    #allocation10 [shape = 'u8[4096]{0}', space=vmem, size = 0x1000, scoped, tag = 'output window, operand 2']
    %10 = vsyncpa [#allocation3], 0
    %s11 = scalar_lea.sflag [#allocation3], 1
    %12 = vsyncpa %s11, 0
    %13 = vsyncpa [#allocation6], 0
    %s14 = scalar_lea.sflag [#allocation6], 1
    %15 = vsyncpa %s14, 0
    %16 = vsyncpa [#allocation4], 0
    %s17 = scalar_lea.sflag [#allocation4], 1
    %18 = vsyncpa %s17, 0
    %19 = vsyncpa [#allocation9], 0
    %s20 = scalar_lea.sflag [#allocation9], 1
    %21 = vsyncpa %s20, 0
    loop: start=0, step=1, limit=4
    $region2: #{tpu_custom_call.1} parent=1 // loop_pre_header
      _
    $region3: #{tpu_custom_call.1} parent=1 // loop_header
      %s23 = sphi 0, %s27
      %p24 = scmp.ge.s32.totalorder %s23, 4
      %s30 = sphi 0, %s42
      %s31 = sphi 0, %s38
      %s32 = sphi 0, %s30
      %s33 = sphi 0, %s31
      %s34 = sphi 0, %s32
      %s35 = sphi 0, %s33
      %s47 = sphi 0, %s49
      %s50 = sphi 0, %s47
      %s51 = sphi 0, %s50
      %s67 = sphi 0, %s51
      %s75 = sphi 0, %s77
      %s78 = sphi 0, %s75
      %s79 = sphi 0, %s78
      %s95 = sphi 0, %s79
      %s101 = sphi 0, %s103
      %s104 = sphi 0, %s101
      %s105 = sphi 0, %s104
      %s121 = sphi 0, %s105
      %s127 = sphi 0, %s129
      %s130 = sphi 0, %s127
      %s131 = sphi 0, %s130
      %s147 = sphi 0, %s131
      %s153 = sphi 0, %s155
      %s156 = sphi 0, %s153
      %s157 = sphi 0, %s156
      %s173 = sphi 0, %s157
    $region4: #{tpu_custom_call.1} parent=1 // loop_header_branch
      %26 = sbr.rel (%p24) target = $region8
    $region5: #{tpu_custom_call.1} parent=1 // loop_body
      %s28 = ssub.s32 %s23, 1
      %s29 = ssub.s32 %s23, 2
      %s36 = sadd.s32 1, %s31
      %p37 = scmp.ge.s32.totalorder %s36, 1
      %s38 = scalar_select %p37, 0, %s36
      %s39 = sadd.s32 1, %s30
      %s40 = scalar_select %p37, %s39, %s30
      %p41 = scmp.ge.s32.totalorder %s40, 2
      %s42 = scalar_select %p41, 0, %s40
      %s43 = ssub.s32 %s30, %s42
      %s44 = ssub.s32 %s31, %s38
      %s45 = sor.u32 %s43, %s44
      %p46 = scmp.eq.s32.totalorder %s45, 0
      %s48 = sadd.s32 %s47, 1
      %s49 = scalar_select %p46, %s47, %s48
      %p52 = pneg %p46
      %p53 = scmp.eq.s32.totalorder %s23, 1
      %p54 = por %p52, %p53
      %p55 = scmp.ne.s32.totalorder %s47, %s50
      %p56 = scmp.eq.s32.totalorder %s23, 0
      %p57 = por %p55, %p56
      %p58 = scmp.ne.s32.totalorder %s47, %s50
      %p59 = scmp.eq.s32.totalorder %s28, 1
      %p60 = por %p58, %p59
      %p61 = scmp.ne.s32.totalorder %s50, %s51
      %p62 = scmp.eq.s32.totalorder %s28, 0
      %p63 = por %p61, %p62
      %p64 = scmp.ne.s32.totalorder %s50, %s51
      %p65 = scmp.eq.s32.totalorder %s29, 1
      %p66 = por %p64, %p65
      %p68 = scmp.ne.s32.totalorder %s51, %s67
      %p69 = scmp.eq.s32.totalorder %s29, 0
      %p70 = por %p68, %p69
      %s71 = ssub.s32 %s30, %s42
      %s72 = ssub.s32 %s31, %s38
      %s73 = sor.u32 %s71, %s72
      %p74 = scmp.eq.s32.totalorder %s73, 0
      %s76 = sadd.s32 %s75, 1
      %s77 = scalar_select %p74, %s75, %s76
      %p80 = pneg %p74
      %p81 = scmp.eq.s32.totalorder %s23, 1
      %p82 = por %p80, %p81
      %p83 = scmp.ne.s32.totalorder %s75, %s78
      %p84 = scmp.eq.s32.totalorder %s23, 0
      %p85 = por %p83, %p84
      %p86 = scmp.ne.s32.totalorder %s75, %s78
      %p87 = scmp.eq.s32.totalorder %s28, 1
      %p88 = por %p86, %p87
      %p89 = scmp.ne.s32.totalorder %s78, %s79
      %p90 = scmp.eq.s32.totalorder %s28, 0
      %p91 = por %p89, %p90
      %p92 = scmp.ne.s32.totalorder %s78, %s79
      %p93 = scmp.eq.s32.totalorder %s29, 1
      %p94 = por %p92, %p93
      %p96 = scmp.ne.s32.totalorder %s79, %s95
      %p97 = scmp.eq.s32.totalorder %s29, 0
      %p98 = por %p96, %p97
      %s99 = ssub.s32 %s30, %s42
      %p100 = scmp.eq.s32.totalorder %s99, 0
      %s102 = sadd.s32 %s101, 1
      %s103 = scalar_select %p100, %s101, %s102
      %p106 = pneg %p100
      %p107 = scmp.eq.s32.totalorder %s23, 1
      %p108 = por %p106, %p107
      %p109 = scmp.ne.s32.totalorder %s101, %s104
      %p110 = scmp.eq.s32.totalorder %s23, 0
      %p111 = por %p109, %p110
      %p112 = scmp.ne.s32.totalorder %s101, %s104
      %p113 = scmp.eq.s32.totalorder %s28, 1
      %p114 = por %p112, %p113
      %p115 = scmp.ne.s32.totalorder %s104, %s105
      %p116 = scmp.eq.s32.totalorder %s28, 0
      %p117 = por %p115, %p116
      %p118 = scmp.ne.s32.totalorder %s104, %s105
      %p119 = scmp.eq.s32.totalorder %s29, 1
      %p120 = por %p118, %p119
      %p122 = scmp.ne.s32.totalorder %s105, %s121
      %p123 = scmp.eq.s32.totalorder %s29, 0
      %p124 = por %p122, %p123
      %s125 = ssub.s32 %s30, %s42
      %p126 = scmp.eq.s32.totalorder %s125, 0
      %s128 = sadd.s32 %s127, 1
      %s129 = scalar_select %p126, %s127, %s128
      %p132 = pneg %p126
      %p133 = scmp.eq.s32.totalorder %s23, 1
      %p134 = por %p132, %p133
      %p135 = scmp.ne.s32.totalorder %s127, %s130
      %p136 = scmp.eq.s32.totalorder %s23, 0
      %p137 = por %p135, %p136
      %p138 = scmp.ne.s32.totalorder %s127, %s130
      %p139 = scmp.eq.s32.totalorder %s28, 1
      %p140 = por %p138, %p139
      %p141 = scmp.ne.s32.totalorder %s130, %s131
      %p142 = scmp.eq.s32.totalorder %s28, 0
      %p143 = por %p141, %p142
      %p144 = scmp.ne.s32.totalorder %s130, %s131
      %p145 = scmp.eq.s32.totalorder %s29, 1
      %p146 = por %p144, %p145
      %p148 = scmp.ne.s32.totalorder %s131, %s147
      %p149 = scmp.eq.s32.totalorder %s29, 0
      %p150 = por %p148, %p149
      %s151 = ssub.s32 %s30, %s42
      %p152 = scmp.eq.s32.totalorder %s151, 0
      %s154 = sadd.s32 %s153, 1
      %s155 = scalar_select %p152, %s153, %s154
      %p158 = pneg %p152
      %p159 = scmp.eq.s32.totalorder %s23, 1
      %p160 = por %p158, %p159
      %p161 = scmp.ne.s32.totalorder %s153, %s156
      %p162 = scmp.eq.s32.totalorder %s23, 0
      %p163 = por %p161, %p162
      %p164 = scmp.ne.s32.totalorder %s153, %s156
      %p165 = scmp.eq.s32.totalorder %s28, 1
      %p166 = por %p164, %p165
      %p167 = scmp.ne.s32.totalorder %s156, %s157
      %p168 = scmp.eq.s32.totalorder %s28, 0
      %p169 = por %p167, %p168
      %p170 = scmp.ne.s32.totalorder %s156, %s157
      %p171 = scmp.eq.s32.totalorder %s29, 1
      %p172 = por %p170, %p171
      %p174 = scmp.ne.s32.totalorder %s157, %s173
      %p175 = scmp.eq.s32.totalorder %s29, 0
      %p176 = por %p174, %p175
      %p177 = scmp.le.s32.totalorder 1, %s23
      %p178 = scmp.lt.s32.totalorder %s23, 3
      %p179 = pnand %p177, %p178
      %p180 = pneg %p179
      // Predicated region
      $region9: #{tpu_custom_call.1} parent=5 // pred_check
        _
      $region10: #{tpu_custom_call.1} parent=5 // pred_check_branch
        %182 = sbr.rel (%p179) target = $region12
      $region11: #{tpu_custom_call.1} parent=5 // pred_region
        %s183 = ssub.s32 %s23, 1
      $region12: #{tpu_custom_call.1} parent=5 // pred_fallthru
        _
      %p184 = scmp.lt.s32.totalorder %s23, 2
      // Predicated region
      $region13: #{tpu_custom_call.1} parent=5 // pred_check
        %p185 = pneg %p184
      $region14: #{tpu_custom_call.1} parent=5 // pred_check_branch
        %187 = sbr.rel (%p185) target = $region16
      $region15: #{tpu_custom_call.1} parent=5 // pred_region
        // Predicated region
        $region17: #{tpu_custom_call.1} parent=15 // pred_check
          %p188 = pneg %p57
        $region18: #{tpu_custom_call.1} parent=15 // pred_check_branch
          %190 = sbr.rel (%p188) target = $region20
        $region19: #{tpu_custom_call.1} parent=15 // pred_region
          %s191 = sand.u32 %s47, 1
          %s192 = scalar_lea.sflag [#allocation3], %s191
          %s193 = sand.u32 %s47, 1
          %s194 = smul.addr %s193, 8
          %s195 = scalar_lea.vmem [#allocation2], %s194
          %s196 = smul.u32 2, %s31
          %s198 = ssub.s32 128, 128
          %199 = vsyncadd %s192, %s198
          %s200 = smul.addr %s30, 2
          %s201 = sadd.s32 %s196, %s200
          %s202 = smul.addr %s201, 64
          %s203 = scalar_lea.hbm %s0, %s202
          %s205 = sshll.u32 %s195, 4
          %s206 = int_to_ptr.vmem [resolvable:$true] %s205
          %208 = dma.hbm_to_vmem [thread:$0]  %s203, 128, %s206, %s192
        $region20: #{tpu_custom_call.1} parent=15 // pred_fallthru
          _
        // Predicated region
        $region21: #{tpu_custom_call.1} parent=15 // pred_check
          %p209 = pneg %p85
        $region22: #{tpu_custom_call.1} parent=15 // pred_check_branch
          %211 = sbr.rel (%p209) target = $region24
        $region23: #{tpu_custom_call.1} parent=15 // pred_region
          %s212 = sand.u32 %s75, 1
          %s213 = scalar_lea.sflag [#allocation6], %s212
          %s214 = sand.u32 %s75, 1
          %s215 = smul.addr %s214, 2
          %s216 = scalar_lea.vmem [#allocation5], %s215
          %s217 = smul.u32 2, %s31
          %s219 = ssub.s32 32, 32
          %220 = vsyncadd %s213, %s219
          %s221 = smul.addr %s30, 2
          %s222 = sadd.s32 %s217, %s221
          %s223 = smul.addr %s222, 16
          %s224 = scalar_lea.hbm %s1, %s223
          %s226 = sshll.u32 %s216, 4
          %s227 = int_to_ptr.vmem [resolvable:$true] %s226
          %229 = dma.hbm_to_vmem [thread:$0]  %s224, 32, %s227, %s213
        $region24: #{tpu_custom_call.1} parent=15 // pred_fallthru
          _
      $region16: #{tpu_custom_call.1} parent=5 // pred_fallthru
        _
      %p230 = scmp.le.s32.totalorder 1, %s23
      %p231 = scmp.lt.s32.totalorder %s23, 3
      %p232 = pnand %p230, %p231
      %p233 = pneg %p232
      // Predicated region
      $region25: #{tpu_custom_call.1} parent=5 // pred_check
        _
      $region26: #{tpu_custom_call.1} parent=5 // pred_check_branch
        %235 = sbr.rel (%p232) target = $region28
      $region27: #{tpu_custom_call.1} parent=5 // pred_region
        %s236 = ssub.s32 %s23, 1
        %s237 = sand.u32 %s50, 1
        %s238 = scalar_lea.sflag [#allocation3], %s237
        %s239 = sand.u32 %s50, 1
        %s240 = smul.addr %s239, 8
        %s241 = scalar_lea.vmem [#allocation2], %s240
        // Predicated region
        $region29: #{tpu_custom_call.1} parent=27 // pred_check
          %p242 = pneg %p63
        $region30: #{tpu_custom_call.1} parent=27 // pred_check_branch
          %244 = sbr.rel (%p242) target = $region32
        $region31: #{tpu_custom_call.1} parent=27 // pred_region
          %245 = dma.done %s238, 128
        $region32: #{tpu_custom_call.1} parent=27 // pred_fallthru
          _
        %s246 = sand.u32 %s78, 1
        %s247 = scalar_lea.sflag [#allocation6], %s246
        %s248 = sand.u32 %s78, 1
        %s249 = smul.addr %s248, 2
        %s250 = scalar_lea.vmem [#allocation5], %s249
        // Predicated region
        $region33: #{tpu_custom_call.1} parent=27 // pred_check
          %p251 = pneg %p91
        $region34: #{tpu_custom_call.1} parent=27 // pred_check_branch
          %253 = sbr.rel (%p251) target = $region36
        $region35: #{tpu_custom_call.1} parent=27 // pred_region
          %254 = dma.done %s247, 32
        $region36: #{tpu_custom_call.1} parent=27 // pred_fallthru
          _
        %s255 = sand.u32 %s50, 1
        %s256 = scalar_lea.sflag [#allocation3], %s255
        %s257 = sand.u32 %s50, 1
        %s258 = smul.addr %s257, 8
        %s259 = scalar_lea.vmem [#allocation2], %s258
        %p260 = pneg %p63
        %p261 = pneg %p60
        %s262 = sand.u32 %s78, 1
        %s263 = scalar_lea.sflag [#allocation6], %s262
        %s264 = sand.u32 %s78, 1
        %s265 = smul.addr %s264, 2
        %s266 = scalar_lea.vmem [#allocation5], %s265
        %p267 = pneg %p91
        %p268 = pneg %p88
        %p269 = pneg %p117
        %p270 = pneg %p114
        %s271 = sand.u32 %s104, 1
        %s272 = scalar_lea.sflag [#allocation4], %s271
        %s273 = sand.u32 %s104, 1
        %s274 = smul.addr %s273, 4
        %s275 = scalar_lea.vmem [#allocation7], %s274
        %p276 = pneg %p143
        %p277 = pneg %p140
        %s278 = sand.u32 %s28, 1
        %s279 = scalar_lea.sflag [#allocation9], %s278
        %s280 = sand.u32 %s130, 1
        %s281 = smul.addr %s280, 4
        %s282 = scalar_lea.vmem [#allocation8], %s281
        %p283 = pneg %p169
        %p284 = pneg %p166
        %s285 = sand.u32 %s28, 1
        %s286 = scalar_lea.sflag [#allocation9], %s285
        %s287 = sand.u32 %s156, 1
        %s288 = smul.addr %s287, 4
        %s289 = scalar_lea.vmem [#allocation10], %s288
        %s290 = smul.u32 2, %s33
        %s291 = smul.u32 2, %s33
        %p292 = scmp.eq.s32.totalorder %s33, 0
        // Predicated region
        $region37: #{tpu_custom_call.1} parent=27 // pred_check
          %p293 = pneg %p292
        $region38: #{tpu_custom_call.1} parent=27 // pred_check_branch
          %295 = sbr.rel (%p293) target = $region40
        $region39: #{tpu_custom_call.1} parent=27 // pred_region
          %296 = vst [vmem:[%s275] sm:$0xf] 0.0
          %297 = vst [vmem:[%s282] sm:$0xf] 0.0
          %298 = vst [vmem:[%s289] sm:$0xf] 0.0
        $region40: #{tpu_custom_call.1} parent=27 // pred_fallthru
          _
        %v299 = vlaneseq
        %v300 = vshrl.u32 %v299, 7
        %v301 = vld [vmem:[%s241] sm:$0xf]
        %v302 = vld [vmem:[%s250] sm:$0x1]
        %v303 = vlaneseq
        %v304 = vshrl.u32 %v303, 7
        %v305 = vsub.s32 0, %v304
        %v306 = vrot.slane %v302, %v305
        %vm307 = vcmp.eq.s32.totalorder %v306, %v300
        %v308 = vsel %vm307, 1, 0
        %v309 = vcvt.s32.f32 %v308
        %v310 = vmul.f32 %v301, %v309
        %v311 = vadd.f32 %v310, 0.0
        %v312 = vadd.f32 %v301, 0.0
        %v313 = vadd.f32 %v309, 0.0
        %v314 = vld [vmem:[%s241 + $0x4] sm:$0xf]
        %v315 = vld [vmem:[%s250 + $0x1] sm:$0x1]
        %v316 = vlaneseq
        %v317 = vshrl.u32 %v316, 7
        %v318 = vsub.s32 0, %v317
        %v319 = vrot.slane %v315, %v318
        %vm320 = vcmp.eq.s32.totalorder %v319, %v300
        %v321 = vsel %vm320, 1, 0
        %v322 = vcvt.s32.f32 %v321
        %v323 = vmul.f32 %v314, %v322
        %v324 = vadd.f32 %v311, %v323
        %v325 = vadd.f32 %v312, %v314
        %v326 = vadd.f32 %v313, %v322
        %v327 = vld [vmem:[%s275] sm:$0xf]
        %v328 = vadd.f32 %v327, %v324
        %329 = vst [vmem:[%s275] sm:$0xf] %v328
        %v330 = vld [vmem:[%s282] sm:$0xf]
        %v331 = vadd.f32 %v330, %v325
        %332 = vst [vmem:[%s282] sm:$0xf] %v331
        %v333 = vld [vmem:[%s289] sm:$0xf]
        %v334 = vadd.f32 %v333, %v326
        %335 = vst [vmem:[%s289] sm:$0xf] %v334
        %s336 = sand.u32 %s104, 1
        %s337 = scalar_lea.sflag [#allocation4], %s336
        %s338 = sand.u32 %s104, 1
        %s339 = smul.addr %s338, 4
        %s340 = scalar_lea.vmem [#allocation7], %s339
        %s341 = sand.u32 %s28, 1
        %s342 = scalar_lea.sflag [#allocation9], %s341
        %s343 = sand.u32 %s130, 1
        %s344 = smul.addr %s343, 4
        %s345 = scalar_lea.vmem [#allocation8], %s344
        %s346 = sand.u32 %s28, 1
        %s347 = scalar_lea.sflag [#allocation9], %s346
        %s348 = sand.u32 %s156, 1
        %s349 = smul.addr %s348, 4
        %s350 = scalar_lea.vmem [#allocation10], %s349
        // Predicated region
        $region41: #{tpu_custom_call.1} parent=27 // pred_check
          %p351 = pneg %p114
        $region42: #{tpu_custom_call.1} parent=27 // pred_check_branch
          %353 = sbr.rel (%p351) target = $region44
        $region43: #{tpu_custom_call.1} parent=27 // pred_region
          %s355 = ssub.s32 64, 64
          %356 = vsyncadd %s337, %s355
          %s357 = smul.addr %s32, 64
          %s358 = scalar_lea.hbm %s2, %s357
          %s360 = sshll.u32 %s340, 4
          %s361 = int_to_ptr.vmem [resolvable:$true] %s360
          %363 = dma.vmem_to_hbm [thread:$0]  %s361, 64, %s358, %s337
        $region44: #{tpu_custom_call.1} parent=27 // pred_fallthru
          _
        // Predicated region
        $region45: #{tpu_custom_call.1} parent=27 // pred_check
          %p364 = pneg %p140
        $region46: #{tpu_custom_call.1} parent=27 // pred_check_branch
          %366 = sbr.rel (%p364) target = $region48
        $region47: #{tpu_custom_call.1} parent=27 // pred_region
          %s368 = ssub.s32 64, 64
          %369 = vsyncadd %s342, %s368
          %s370 = smul.addr %s32, 64
          %s371 = scalar_lea.hbm %s3, %s370
          %s373 = sshll.u32 %s345, 4
          %s374 = int_to_ptr.vmem [resolvable:$true] %s373
          %376 = dma.vmem_to_hbm [thread:$0]  %s374, 64, %s371, %s342
        $region48: #{tpu_custom_call.1} parent=27 // pred_fallthru
          _
        // Predicated region
        $region49: #{tpu_custom_call.1} parent=27 // pred_check
          %p377 = pneg %p166
        $region50: #{tpu_custom_call.1} parent=27 // pred_check_branch
          %379 = sbr.rel (%p377) target = $region52
        $region51: #{tpu_custom_call.1} parent=27 // pred_region
          %s381 = ssub.s32 64, 64
          %382 = vsyncadd %s347, %s381
          %s383 = smul.addr %s32, 64
          %s384 = scalar_lea.hbm %s4, %s383
          %s386 = sshll.u32 %s350, 4
          %s387 = int_to_ptr.vmem [resolvable:$true] %s386
          %389 = dma.vmem_to_hbm [thread:$0]  %s387, 64, %s384, %s347
        $region52: #{tpu_custom_call.1} parent=27 // pred_fallthru
          _
      $region28: #{tpu_custom_call.1} parent=5 // pred_fallthru
        _
      %p390 = scmp.le.s32.totalorder 2, %s23
      // Predicated region
      $region53: #{tpu_custom_call.1} parent=5 // pred_check
        %p391 = pneg %p390
      $region54: #{tpu_custom_call.1} parent=5 // pred_check_branch
        %393 = sbr.rel (%p391) target = $region56
      $region55: #{tpu_custom_call.1} parent=5 // pred_region
        %s394 = ssub.s32 %s23, 2
        // Predicated region
        $region57: #{tpu_custom_call.1} parent=55 // pred_check
          %p395 = pneg %p120
        $region58: #{tpu_custom_call.1} parent=55 // pred_check_branch
          %397 = sbr.rel (%p395) target = $region60
        $region59: #{tpu_custom_call.1} parent=55 // pred_region
          %s398 = sand.u32 %s105, 1
          %s399 = scalar_lea.sflag [#allocation4], %s398
          %s400 = sand.u32 %s105, 1
          %s401 = smul.addr %s400, 4
          %s402 = scalar_lea.vmem [#allocation7], %s401
          %403 = dma.done %s399, 64
        $region60: #{tpu_custom_call.1} parent=55 // pred_fallthru
          _
        // Predicated region
        $region61: #{tpu_custom_call.1} parent=55 // pred_check
          %p404 = pneg %p146
        $region62: #{tpu_custom_call.1} parent=55 // pred_check_branch
          %406 = sbr.rel (%p404) target = $region64
        $region63: #{tpu_custom_call.1} parent=55 // pred_region
          %s407 = sand.u32 %s29, 1
          %s408 = scalar_lea.sflag [#allocation9], %s407
          %s409 = sand.u32 %s131, 1
          %s410 = smul.addr %s409, 4
          %s411 = scalar_lea.vmem [#allocation8], %s410
          %412 = dma.done %s408, 64
        $region64: #{tpu_custom_call.1} parent=55 // pred_fallthru
          _
        // Predicated region
        $region65: #{tpu_custom_call.1} parent=55 // pred_check
          %p413 = pneg %p172
        $region66: #{tpu_custom_call.1} parent=55 // pred_check_branch
          %415 = sbr.rel (%p413) target = $region68
        $region67: #{tpu_custom_call.1} parent=55 // pred_region
          %s416 = sand.u32 %s29, 1
          %s417 = scalar_lea.sflag [#allocation9], %s416
          %s418 = sand.u32 %s157, 1
          %s419 = smul.addr %s418, 4
          %s420 = scalar_lea.vmem [#allocation10], %s419
          %421 = dma.done %s417, 64
        $region68: #{tpu_custom_call.1} parent=55 // pred_fallthru
          _
      $region56: #{tpu_custom_call.1} parent=5 // pred_fallthru
        _
    $region6: #{tpu_custom_call.1} parent=1 // loop_footer
      %s27 = sadd.s32 1, %s23
    $region7: #{tpu_custom_call.1} parent=1 // loop_footer_branch
      %22 = sbr.rel target = $region3
    $region8: #{tpu_custom_call.1} parent=1 // loop_exit
      _
    %422 = vsyncpa [#allocation3], 1
    %s423 = scalar_lea.sflag [#allocation3], 1
    %424 = vsyncpa %s423, 1
    %425 = vsyncpa [#allocation6], 1
    %s426 = scalar_lea.sflag [#allocation6], 1
    %427 = vsyncpa %s426, 1
    %428 = vsyncpa [#allocation4], 1
    %s429 = scalar_lea.sflag [#allocation4], 1
    %430 = vsyncpa %s429, 1
    %431 = vsyncpa [#allocation9], 1
    %s432 = scalar_lea.sflag [#allocation9], 1
    %433 = vsyncpa %s432, 1

</llo_original>
